<compile_context>
chip_gen: v6e
topology: v6e:2x2x1
jax: 0.10.0
libtpu: 0.0.40
codegen_flags: <defaults>
</compile_context>

<pallas_src>
import jax
import jax.numpy as jnp
from jax.experimental import pallas as pl
from jax.experimental.pallas import tpu as pltpu

_HIDDEN_PAD = 128  # hidden 50 -> 128: whole vregs / single MXU pass


def _round_up(x, m):
    return ((x + m - 1) // m) * m


def mlp_kernel(xt_ref, w1t_ref, b1_ref, w2t_ref, b2_ref, ot_ref):
    # fc1 (transposed): (H, in) @ (in, TB) -> (H, TB); batch lives on lanes.
    h = jnp.dot(w1t_ref[...], xt_ref[...], preferred_element_type=jnp.float32)
    h = jnp.maximum(h + b1_ref[...], 0.0)            # bias broadcast over lanes + ReLU (f32 VPU)
    # fc2 (transposed): (out, H) @ (H, TB) -> (out, TB); lane-dense output block.
    y = jnp.dot(w2t_ref[...], h, preferred_element_type=jnp.float32)
    ot_ref[...] = y + b2_ref[...]


def prepare_params(w1, b1, w2, b2):
    """One-time weight prep (hoisted out of the per-call path).

    w1: (in, hidden), b1: (hidden,), w2: (hidden, out), b2: (out,)  -- x @ W + b convention
    (i.e. transposes of nn.Linear's (out, in) weights). Returns kernel-layout f32 tensors.
    Zero-padding hidden 50 -> 128 is exact (padded w1 rows, b1 entries, w2 cols are zero).
    """
    w1 = jnp.asarray(w1, jnp.float32)
    w2 = jnp.asarray(w2, jnp.float32)
    in_size, hidden = w1.shape
    hidden2, out_size = w2.shape
    assert hidden == hidden2
    H = _round_up(hidden, _HIDDEN_PAD)
    w1_t = jnp.zeros((H, in_size), jnp.float32).at[:hidden, :].set(w1.T)
    b1_c = jnp.zeros((H, 1), jnp.float32).at[:hidden, 0].set(
        jnp.asarray(b1, jnp.float32).reshape(-1))
    w2_t = jnp.zeros((out_size, H), jnp.float32).at[:, :hidden].set(w2.T)
    b2_c = jnp.asarray(b2, jnp.float32).reshape(out_size, 1)
    return dict(w1_t=w1_t, b1_c=b1_c, w2_t=w2_t, b2_c=b2_c,
                in_size=in_size, hidden=hidden, out_size=out_size, H=H)


def net_forward_feature_major(x_t, params, *, max_tile_b=4096):
    """Forward on feature-major activations: x_t (in_size, B) -> (out_size, B).

    Preferred entry point: no transpose pass over x; batch is already lane-dense.
    """
    x_t = jnp.asarray(x_t, jnp.float32)
    in_size, B = x_t.shape
    assert in_size == params["in_size"]
    H, out_size = params["H"], params["out_size"]

    # Pad batch only to a lane multiple (<= 127 wasted columns).
    B_pad = _round_up(B, 128)
    # Large tiles amortize the ~0.35us/grid-step overhead against the HBM stream;
    # cap so the grid has >= 2 "parallel" steps when possible (v7x has 2 TensorCores).
    TB = min(_round_up(max_tile_b, 128), B_pad)
    if B_pad >= 256:
        TB = min(TB, _round_up(-(-B_pad // 2), 128))
    grid = (pl.cdiv(B_pad, TB),)          # cdiv grid: Pallas masks the partial last tile

    if B_pad != B:
        x_t = jnp.pad(x_t, ((0, 0), (0, B_pad - B)))

    flops = 2 * B_pad * (in_size * H + H * out_size)
    bytes_accessed = 4 * (B_pad * (in_size + out_size)
                          + H * (in_size + out_size + 1) + out_size)

    out_t = pl.pallas_call(
        mlp_kernel,
        out_shape=jax.ShapeDtypeStruct((out_size, B_pad), jnp.float32),
        grid=grid,
        in_specs=[
            pl.BlockSpec((in_size, TB), lambda i: (0, i)),   # streamed x tile
            pl.BlockSpec((H, in_size), lambda i: (0, 0)),    # VMEM-resident weights/biases
            pl.BlockSpec((H, 1), lambda i: (0, 0)),
            pl.BlockSpec((out_size, H), lambda i: (0, 0)),
            pl.BlockSpec((out_size, 1), lambda i: (0, 0)),
        ],
        out_specs=pl.BlockSpec((out_size, TB), lambda i: (0, i)),
        compiler_params=pltpu.CompilerParams(
            dimension_semantics=("parallel",)),              # independent batch tiles
        cost_estimate=pl.CostEstimate(
            flops=flops, transcendentals=0, bytes_accessed=bytes_accessed),
    )(x_t, params["w1_t"], params["b1_c"], params["w2_t"], params["b2_c"])

    return out_t[:, :B]


def net_forward(x, params, *, max_tile_b=4096):
    """PyTorch-layout convenience wrapper: x (B, in) -> (B, out).

    Uses one transpose of x; prefer net_forward_feature_major with (in, B) activations
    upstream to avoid that extra HBM pass entirely.
    """
    out_t = net_forward_feature_major(jnp.asarray(x, jnp.float32).T, params,
                                      max_tile_b=max_tile_b)
    return out_t.T


def init_params(key, in_size, out_size, hidden=50):
    """Deterministic init mirroring nn.Linear's U(-1/sqrt(fan_in), 1/sqrt(fan_in))."""
    k1, k2, k3, k4 = jax.random.split(key, 4)
    bound1 = 1.0 / jnp.sqrt(jnp.float32(in_size))
    bound2 = 1.0 / jnp.sqrt(jnp.float32(hidden))
    w1 = jax.random.uniform(k1, (in_size, hidden), jnp.float32, -bound1, bound1)
    b1 = jax.random.uniform(k2, (hidden,), jnp.float32, -bound1, bound1)
    w2 = jax.random.uniform(k3, (hidden, out_size), jnp.float32, -bound2, bound2)
    b2 = jax.random.uniform(k4, (out_size,), jnp.float32, -bound2, bound2)
    return w1, b1, w2, b2


if __name__ == "__main__":
    key = jax.random.PRNGKey(0)
    kx, kx2, kp = jax.random.split(key, 3)

    # Forward implies flat feature vectors: in_size=30 (Scale(30) window), out_size=1.
    in_size, out_size = 30, 1
    w1, b1, w2, b2 = init_params(kp, in_size, out_size)
    params = prepare_params(w1, b1, w2, b2)          # one-time weight prep

    def ref_fn(x):
        return jnp.maximum(x @ w1 + b1[None, :], 0.0) @ w2 + b2[None, :]

    # Check 1: small batch (single tile, grid=(1,)).
    batch = 8
    x = jax.random.uniform(kx, (batch, in_size), jnp.float32)   # normalized-to-[0,1] inputs
    y = jax.block_until_ready(net_forward(x, params))
    assert y.shape == (batch, out_size)
    assert jnp.allclose(y, ref_fn(x), atol=1e-5, rtol=1e-5)

    # Check 2: batch not a multiple of 128 -> exercises cdiv grid (2 parallel tiles,
    # masked partial last block) and the feature-major entry point.
    batch2 = 300
    x2 = jax.random.uniform(kx2, (batch2, in_size), jnp.float32)
    y2_t = jax.block_until_ready(net_forward_feature_major(x2.T, params))
    assert y2_t.shape == (out_size, batch2)
    assert jnp.allclose(y2_t.T, ref_fn(x2), atol=1e-5, rtol=1e-5)

    print("KERNEL_OK")
</pallas_src>

<mosaic_0001>
module attributes {stable_mosaic.version = 11 : i64} {
  func.func @mlp_kernel(%arg0: i32, %arg1: memref<30x128xf32, #tpu.memory_space<vmem>>, %arg2: memref<128x30xf32, #tpu.memory_space<vmem>>, %arg3: memref<128x1xf32, #tpu.memory_space<vmem>>, %arg4: memref<1x128xf32, #tpu.memory_space<vmem>>, %arg5: memref<1x1xf32, #tpu.memory_space<vmem>>, %arg6: memref<1x128xf32, #tpu.memory_space<vmem>>) attributes {dimension_semantics = [#tpu.dimension_semantics<parallel>], iteration_bounds = array<i64: 1>, scalar_prefetch = 0 : i64, scratch_operands = 0 : i64, tpu.core_type = #tpu.core_type<tc>, window_params = [{transform_indices = @transform_0, window_bounds = array<i64: 30, 128>}, {pipeline_mode = #tpu.pipeline_mode<synchronous>, transform_indices = @transform_1, window_bounds = array<i64: 128, 30>}, {pipeline_mode = #tpu.pipeline_mode<synchronous>, transform_indices = @transform_2, window_bounds = array<i64: 128, 1>}, {pipeline_mode = #tpu.pipeline_mode<synchronous>, transform_indices = @transform_3, window_bounds = array<i64: 1, 128>}, {pipeline_mode = #tpu.pipeline_mode<synchronous>, transform_indices = @transform_4, window_bounds = array<i64: 1, 1>}, {transform_indices = @transform_5, window_bounds = array<i64: 1, 128>}]} {
    %c0 = arith.constant 0 : index
    %c0_0 = arith.constant 0 : index
    %0 = vector.load %arg2[%c0, %c0_0] : memref<128x30xf32, #tpu.memory_space<vmem>>, vector<128x30xf32>
    %c0_1 = arith.constant 0 : index
    %c0_2 = arith.constant 0 : index
    %1 = vector.load %arg1[%c0_1, %c0_2] : memref<30x128xf32, #tpu.memory_space<vmem>>, vector<30x128xf32>
    %cst = arith.constant dense<0.000000e+00> : vector<128x128xf32>
    %2 = tpu.matmul %0, %1, %cst {dimension_numbers = #tpu.dot_dimension_numbers<[1], [0], [0], [1], [0, 0, 1, 1], [], []>} : vector<128x30xf32>, vector<30x128xf32>, vector<128x128xf32> -> vector<128x128xf32>
    %c0_3 = arith.constant 0 : index
    %c0_4 = arith.constant 0 : index
    %3 = vector.load %arg3[%c0_3, %c0_4] : memref<128x1xf32, #tpu.memory_space<vmem>>, vector<128x1xf32>
    %4 = vector.broadcast %3 : vector<128x1xf32> to vector<128x128xf32>
    %5 = arith.addf %2, %4 : vector<128x128xf32>
    %cst_5 = arith.constant 0.000000e+00 : f32
    %6 = vector.broadcast %cst_5 : f32 to vector<128x128xf32>
    %7 = arith.maximumf %5, %6 : vector<128x128xf32>
    %c0_6 = arith.constant 0 : index
    %c0_7 = arith.constant 0 : index
    %8 = vector.load %arg4[%c0_6, %c0_7] : memref<1x128xf32, #tpu.memory_space<vmem>>, vector<1x128xf32>
    %cst_8 = arith.constant dense<0.000000e+00> : vector<1x128xf32>
    %9 = tpu.matmul %8, %7, %cst_8 {dimension_numbers = #tpu.dot_dimension_numbers<[1], [0], [0], [1], [0, 0, 1, 1], [], []>} : vector<1x128xf32>, vector<128x128xf32>, vector<1x128xf32> -> vector<1x128xf32>
    %c0_9 = arith.constant 0 : index
    %c0_10 = arith.constant 0 : index
    %10 = vector.load %arg5[%c0_9, %c0_10] : memref<1x1xf32, #tpu.memory_space<vmem>>, vector<1x1xf32>
    %11 = vector.broadcast %10 : vector<1x1xf32> to vector<1x128xf32>
    %12 = arith.addf %9, %11 : vector<1x128xf32>
    %c0_11 = arith.constant 0 : index
    %c0_12 = arith.constant 0 : index
    %13 = vector.load %arg6[%c0_11, %c0_12] : memref<1x128xf32, #tpu.memory_space<vmem>>, vector<1x128xf32>
    tpu.vector_store %arg6[%c0_11, %c0_12], %12 {strides = array<i32>} : memref<1x128xf32, #tpu.memory_space<vmem>>, vector<1x128xf32>,
    return
  }
  func.func @transform_0(%arg0: i32) -> (i32, i32) {
    %c0_i32 = arith.constant 0 : i32
    %c0_i32_0 = arith.constant 0 : i32
    return %c0_i32, %arg0 : i32, i32
  }
  func.func @transform_1(%arg0: i32) -> (i32, i32) {
    %c0_i32 = arith.constant 0 : i32
    %c0_i32_0 = arith.constant 0 : i32
    %c0_i32_1 = arith.constant 0 : i32
    return %c0_i32, %c0_i32_0 : i32, i32
  }
  func.func @transform_2(%arg0: i32) -> (i32, i32) {
    %c0_i32 = arith.constant 0 : i32
    %c0_i32_0 = arith.constant 0 : i32
    %c0_i32_1 = arith.constant 0 : i32
    return %c0_i32, %c0_i32_0 : i32, i32
  }
  func.func @transform_3(%arg0: i32) -> (i32, i32) {
    %c0_i32 = arith.constant 0 : i32
    %c0_i32_0 = arith.constant 0 : i32
    %c0_i32_1 = arith.constant 0 : i32
    return %c0_i32, %c0_i32_0 : i32, i32
  }
  func.func @transform_4(%arg0: i32) -> (i32, i32) {
    %c0_i32 = arith.constant 0 : i32
    %c0_i32_0 = arith.constant 0 : i32
    %c0_i32_1 = arith.constant 0 : i32
    return %c0_i32, %c0_i32_0 : i32, i32
  }
  func.func @transform_5(%arg0: i32) -> (i32, i32) {
    %c0_i32 = arith.constant 0 : i32
    %c0_i32_0 = arith.constant 0 : i32
    return %c0_i32, %arg0 : i32, i32
  }
}

</mosaic_0001>

<llo_original>
// kernel: tpu_custom_call.1
$region0: #{tpu_custom_call.1}
  #allocation0 [shape = 'u32[]', space=smem, size = 0x4, offset = 0x4, fixed_abs, tag = 'smem constant byte address 0x4 - core index']
  #allocation1 [shape = 'u32[144,128]{1,0:T(1,128)}', space=vmem, size = 0x12000, scoped, tag = 'internal scratch']
  #allocation2 [shape = 'f32[1,1]{1,0:T(1,128)S(1)}', space=vmem, size = 0x200, scoped, tag = 'scoped memory for tpu_custom_call.1']
  %s0 = inlined_call_operand.vmem [shape: f32[30,128], index: 0, kind: input, shape index: {}]
  %s1 = inlined_call_operand.vmem [shape: f32[128,30], index: 1, kind: input, shape index: {}]
  %s2 = inlined_call_operand.vmem [shape: f32[128,1], index: 2, kind: input, shape index: {}]
  %s3 = inlined_call_operand.vmem [shape: f32[1,128], index: 3, kind: input, shape index: {}]
  %s4 = inlined_call_operand.<no memory space> [shape: f32[1,1], index: 4, kind: input, shape index: {}]
  %s5 = inlined_call_operand.hbm [shape: f32[1,128], index: 5, kind: output, shape index: {}]
  %s6 = sld [smem:[#allocation0]]
  $region30: #{tpu_custom_call.1} parent=0
    _
  %s8 = ssub.s32 1, %s6
  %s9 = scalar_select 0, %s8, %s6
  %v10 = vstv %s4
  %11 = vst [vmem:[#allocation2] sm:$0x1] %v10
  $region1: #{tpu_custom_call.1} parent=0
    #allocation3 [shape = 'u8[512]{0}', space=vmem, size = 0x400, scoped, tag = 'output window, operand 0, single buffered']
    #allocation4 [shape = 's32[1]{0}', space=sflag, size = 0x4, scoped, tag = 'scoped memory for tpu_custom_call.1']
    %12 = vsyncpa [#allocation4], 0
    // Predicated region
    $region2: #{tpu_custom_call.1} parent=1 // pred_check
      _
    $region3: #{tpu_custom_call.1} parent=1 // pred_check_branch
      %14 = sbr.rel (0) target = $region5
    $region4: #{tpu_custom_call.1} parent=1 // pred_region
      _
    $region5: #{tpu_custom_call.1} parent=1 // pred_fallthru
      _
    // Predicated region
    $region6: #{tpu_custom_call.1} parent=1 // pred_check
      _
    $region7: #{tpu_custom_call.1} parent=1 // pred_check_branch
      %16 = sbr.rel (0) target = $region9
    $region8: #{tpu_custom_call.1} parent=1 // pred_region
      _
    $region9: #{tpu_custom_call.1} parent=1 // pred_fallthru
      _
    // Predicated region
    $region10: #{tpu_custom_call.1} parent=1 // pred_check
      _
    $region11: #{tpu_custom_call.1} parent=1 // pred_check_branch
      %18 = sbr.rel (0) target = $region13
    $region12: #{tpu_custom_call.1} parent=1 // pred_region
      _
    $region13: #{tpu_custom_call.1} parent=1 // pred_fallthru
      _
    // Predicated region
    $region14: #{tpu_custom_call.1} parent=1 // pred_check
      _
    $region15: #{tpu_custom_call.1} parent=1 // pred_check_branch
      %20 = sbr.rel (0) target = $region17
    $region16: #{tpu_custom_call.1} parent=1 // pred_region
      _
    $region17: #{tpu_custom_call.1} parent=1 // pred_fallthru
      _
    // Predicated region
    $region18: #{tpu_custom_call.1} parent=1 // pred_check
      _
    $region19: #{tpu_custom_call.1} parent=1 // pred_check_branch
      %22 = sbr.rel (0) target = $region21
    $region20: #{tpu_custom_call.1} parent=1 // pred_region
      _
    $region21: #{tpu_custom_call.1} parent=1 // pred_fallthru
      _
    %v23 = vld [vmem:[%s1] sm:$0xff]
    %v24 = vld [vmem:[%s1 + $0x8] sm:$0xff]
    %v25 = vld [vmem:[%s1 + $0x10] sm:$0xff]
    %v26 = vld [vmem:[%s1 + $0x18] sm:$0xff]
    %v27 = vld [vmem:[%s1 + $0x20] sm:$0xff]
    %v28 = vld [vmem:[%s1 + $0x28] sm:$0xff]
    %v29 = vld [vmem:[%s1 + $0x30] sm:$0xff]
    %v30 = vld [vmem:[%s1 + $0x38] sm:$0xff]
    %v31 = vld [vmem:[%s1 + $0x40] sm:$0xff]
    %v32 = vld [vmem:[%s1 + $0x48] sm:$0xff]
    %v33 = vld [vmem:[%s1 + $0x50] sm:$0xff]
    %v34 = vld [vmem:[%s1 + $0x58] sm:$0xff]
    %v35 = vld [vmem:[%s1 + $0x60] sm:$0xff]
    %v36 = vld [vmem:[%s1 + $0x68] sm:$0xff]
    %v37 = vld [vmem:[%s1 + $0x70] sm:$0xff]
    %v38 = vld [vmem:[%s1 + $0x78] sm:$0xff]
    %v39 = vld [vmem:[%s0] sm:$0xff]
    %v40 = vld [vmem:[%s0 + $0x8] sm:$0xff]
    %v41 = vld [vmem:[%s0 + $0x10] sm:$0xff]
    %v42 = vld [vmem:[%s0 + $0x18] sm:$0x3f]
    %v43 = vld [vmem:[%s2] sm:$0xff]
    %v44 = vld [vmem:[%s2 + $0x8] sm:$0xff]
    %v45 = vld [vmem:[%s2 + $0x10] sm:$0xff]
    %v46 = vld [vmem:[%s2 + $0x18] sm:$0xff]
    %v47 = vld [vmem:[%s2 + $0x20] sm:$0xff]
    %v48 = vld [vmem:[%s2 + $0x28] sm:$0xff]
    %v49 = vld [vmem:[%s2 + $0x30] sm:$0xff]
    %v50 = vld [vmem:[%s2 + $0x38] sm:$0xff]
    %v51 = vld [vmem:[%s2 + $0x40] sm:$0xff]
    %v52 = vld [vmem:[%s2 + $0x48] sm:$0xff]
    %v53 = vld [vmem:[%s2 + $0x50] sm:$0xff]
    %v54 = vld [vmem:[%s2 + $0x58] sm:$0xff]
    %v55 = vld [vmem:[%s2 + $0x60] sm:$0xff]
    %v56 = vld [vmem:[%s2 + $0x68] sm:$0xff]
    %v57 = vld [vmem:[%s2 + $0x70] sm:$0xff]
    %v58 = vld [vmem:[%s2 + $0x78] sm:$0xff]
    %60 = vset.pattern.permute.xlu0 0
    %61 = vperm.xlu0 %60, %v43
    %v62 = vpop.permute.xlu0 %61
    %65 = vset.pattern.permute.xlu0 0
    %66 = vperm.xlu0 %65, %v44
    %v67 = vpop.permute.xlu0 %66
    %70 = vset.pattern.permute.xlu0 0
    %71 = vperm.xlu0 %70, %v45
    %v72 = vpop.permute.xlu0 %71
    %75 = vset.pattern.permute.xlu0 0
    %76 = vperm.xlu0 %75, %v46
    %v77 = vpop.permute.xlu0 %76
    %80 = vset.pattern.permute.xlu0 0
    %81 = vperm.xlu0 %80, %v47
    %v82 = vpop.permute.xlu0 %81
    %85 = vset.pattern.permute.xlu0 0
    %86 = vperm.xlu0 %85, %v48
    %v87 = vpop.permute.xlu0 %86
    %90 = vset.pattern.permute.xlu0 0
    %91 = vperm.xlu0 %90, %v49
    %v92 = vpop.permute.xlu0 %91
    %95 = vset.pattern.permute.xlu0 0
    %96 = vperm.xlu0 %95, %v50
    %v97 = vpop.permute.xlu0 %96
    %100 = vset.pattern.permute.xlu0 0
    %101 = vperm.xlu0 %100, %v51
    %v102 = vpop.permute.xlu0 %101
    %105 = vset.pattern.permute.xlu0 0
    %106 = vperm.xlu0 %105, %v52
    %v107 = vpop.permute.xlu0 %106
    %110 = vset.pattern.permute.xlu0 0
    %111 = vperm.xlu0 %110, %v53
    %v112 = vpop.permute.xlu0 %111
    %115 = vset.pattern.permute.xlu0 0
    %116 = vperm.xlu0 %115, %v54
    %v117 = vpop.permute.xlu0 %116
    %120 = vset.pattern.permute.xlu0 0
    %121 = vperm.xlu0 %120, %v55
    %v122 = vpop.permute.xlu0 %121
    %125 = vset.pattern.permute.xlu0 0
    %126 = vperm.xlu0 %125, %v56
    %v127 = vpop.permute.xlu0 %126
    %130 = vset.pattern.permute.xlu0 0
    %131 = vperm.xlu0 %130, %v57
    %v132 = vpop.permute.xlu0 %131
    %135 = vset.pattern.permute.xlu0 0
    %136 = vperm.xlu0 %135, %v58
    %v137 = vpop.permute.xlu0 %136
    %vm139 = vcmask 244736
    %v141 = vsel %vm139, %v23, 0
    %v144 = vsel %vm139, %v24, 0
    %v147 = vsel %vm139, %v25, 0
    %v150 = vsel %vm139, %v26, 0
    %v153 = vsel %vm139, %v27, 0
    %v156 = vsel %vm139, %v28, 0
    %v159 = vsel %vm139, %v29, 0
    %v162 = vsel %vm139, %v30, 0
    %v165 = vsel %vm139, %v31, 0
    %v168 = vsel %vm139, %v32, 0
    %v171 = vsel %vm139, %v33, 0
    %v174 = vsel %vm139, %v34, 0
    %v177 = vsel %vm139, %v35, 0
    %v180 = vsel %vm139, %v36, 0
    %v183 = vsel %vm139, %v37, 0
    %v186 = vsel %vm139, %v38, 0
    %vm188 = vcmask 1045504
    %v190 = vsel %vm188, %v42, 0
    %192 = vmatprep.subr.mxu0 0.0
    %193 = vmatpush1.msra.mxu0 0.0
    %194 = vmatprep.subr.mxu0 0.0
    %195 = vmatpush1.msra.mxu0 0.0
    %196 = vmatprep.subr.mxu0 0.0
    %197 = vmatpush1.msra.mxu0 0.0
    %198 = vmatprep.subr.mxu0 0.0
    %199 = vmatpush1.msra.mxu0 0.0
    %200 = vmatprep.subr.mxu0 0.0
    %201 = vmatpush1.msra.mxu0 0.0
    %202 = vmatprep.subr.mxu0 0.0
    %203 = vmatpush1.msra.mxu0 0.0
    %204 = vmatprep.subr.mxu0 0.0
    %205 = vmatpush1.msra.mxu0 0.0
    %206 = vmatprep.subr.mxu0 0.0
    %207 = vmatpush1.msra.mxu0 0.0
    %208 = vmatprep.subr.mxu0 0.0
    %209 = vmatpush1.msra.mxu0 0.0
    %210 = vmatprep.subr.mxu0 0.0
    %211 = vmatpush1.msra.mxu0 0.0
    %212 = vmatprep.subr.mxu0 0.0
    %213 = vmatpush1.msra.mxu0 0.0
    %214 = vmatprep.subr.mxu0 0.0
    %215 = vmatpush1.msra.mxu0 0.0
    %216 = vmatprep.subr.mxu0 0.0
    %217 = vmatpush1.msra.mxu0 %v190
    %218 = vmatprep.subr.mxu0 0.0
    %219 = vmatpush1.msra.mxu0 %v41
    %220 = vmatprep.subr.mxu0 0.0
    %221 = vmatpush1.msra.mxu0 %v40
    %222 = vmatprep.subr.mxu0 0.0
    %223 = vmatpush1.msra.mxu0 %v39
    %224 = vmatprep.subr.mxu0 0.0
    %225 = vmatpush2.msra.mxu0 0.0
    %226 = vmatprep.subr.mxu0 0.0
    %227 = vmatpush2.msra.mxu0 0.0
    %228 = vmatprep.subr.mxu0 0.0
    %229 = vmatpush2.msra.mxu0 0.0
    %230 = vmatprep.subr.mxu0 0.0
    %231 = vmatpush2.msra.mxu0 0.0
    %232 = vmatprep.subr.mxu0 0.0
    %233 = vmatpush2.msra.mxu0 0.0
    %234 = vmatprep.subr.mxu0 0.0
    %235 = vmatpush2.msra.mxu0 0.0
    %236 = vmatprep.subr.mxu0 0.0
    %237 = vmatpush2.msra.mxu0 0.0
    %238 = vmatprep.subr.mxu0 0.0
    %239 = vmatpush2.msra.mxu0 0.0
    %240 = vmatprep.subr.mxu0 0.0
    %241 = vmatpush2.msra.mxu0 0.0
    %242 = vmatprep.subr.mxu0 0.0
    %243 = vmatpush2.msra.mxu0 0.0
    %244 = vmatprep.subr.mxu0 0.0
    %245 = vmatpush2.msra.mxu0 0.0
    %246 = vmatprep.subr.mxu0 0.0
    %247 = vmatpush2.msra.mxu0 0.0
    %248 = vmatprep.subr.mxu0 0.0
    %249 = vmatpush2.msra.mxu0 0.0
    %250 = vmatprep.subr.mxu0 0.0
    %251 = vmatpush2.msra.mxu0 0.0
    %252 = vmatprep.subr.mxu0 0.0
    %253 = vmatpush2.msra.mxu0 0.0
    %254 = vmatprep.subr.mxu0 0.0
    %255 = vmatpush2.msra.mxu0 0.0
    %256 = vmatprep.mubr.f32.mxu0 0.0
    %257 = vmatmul.mubr.f32.gmra.mxu0 %v141
    %v258 = vpop.f32.mrf.mxu0
    %v259 = vadd.f32 %v62, %v258
    %v260 = vpop.f32.mrf.mxu0
    %261 = vmatprep.mubr.f32.mxu0 0.0
    %262 = vmatmul.mubr.f32.gmra.mxu0 %v144
    %v263 = vpop.f32.mrf.mxu0
    %v264 = vadd.f32 %v67, %v263
    %v265 = vpop.f32.mrf.mxu0
    %266 = vmatprep.mubr.f32.mxu0 0.0
    %267 = vmatmul.mubr.f32.gmra.mxu0 %v147
    %v268 = vpop.f32.mrf.mxu0
    %v269 = vadd.f32 %v72, %v268
    %v270 = vpop.f32.mrf.mxu0
    %271 = vmatprep.mubr.f32.mxu0 0.0
    %272 = vmatmul.mubr.f32.gmra.mxu0 %v150
    %v273 = vpop.f32.mrf.mxu0
    %v274 = vadd.f32 %v77, %v273
    %v275 = vpop.f32.mrf.mxu0
    %276 = vmatprep.mubr.f32.mxu0 0.0
    %277 = vmatmul.mubr.f32.gmra.mxu0 %v153
    %v278 = vpop.f32.mrf.mxu0
    %v279 = vadd.f32 %v82, %v278
    %v280 = vpop.f32.mrf.mxu0
    %281 = vmatprep.mubr.f32.mxu0 0.0
    %282 = vmatmul.mubr.f32.gmra.mxu0 %v156
    %v283 = vpop.f32.mrf.mxu0
    %v284 = vadd.f32 %v87, %v283
    %v285 = vpop.f32.mrf.mxu0
    %286 = vmatprep.mubr.f32.mxu0 0.0
    %287 = vmatmul.mubr.f32.gmra.mxu0 %v159
    %v288 = vpop.f32.mrf.mxu0
    %v289 = vadd.f32 %v92, %v288
    %v290 = vpop.f32.mrf.mxu0
    %291 = vmatprep.mubr.f32.mxu0 0.0
    %292 = vmatmul.mubr.f32.gmra.mxu0 %v162
    %v293 = vpop.f32.mrf.mxu0
    %v294 = vadd.f32 %v97, %v293
    %v295 = vpop.f32.mrf.mxu0
    %296 = vmatprep.mubr.f32.mxu0 0.0
    %297 = vmatmul.mubr.f32.gmra.mxu0 %v165
    %v298 = vpop.f32.mrf.mxu0
    %v299 = vadd.f32 %v102, %v298
    %v300 = vpop.f32.mrf.mxu0
    %301 = vmatprep.mubr.f32.mxu0 0.0
    %302 = vmatmul.mubr.f32.gmra.mxu0 %v168
    %v303 = vpop.f32.mrf.mxu0
    %v304 = vadd.f32 %v107, %v303
    %v305 = vpop.f32.mrf.mxu0
    %306 = vmatprep.mubr.f32.mxu0 0.0
    %307 = vmatmul.mubr.f32.gmra.mxu0 %v171
    %v308 = vpop.f32.mrf.mxu0
    %v309 = vadd.f32 %v112, %v308
    %v310 = vpop.f32.mrf.mxu0
    %311 = vmatprep.mubr.f32.mxu0 0.0
    %312 = vmatmul.mubr.f32.gmra.mxu0 %v174
    %v313 = vpop.f32.mrf.mxu0
    %v314 = vadd.f32 %v117, %v313
    %v315 = vpop.f32.mrf.mxu0
    %316 = vmatprep.mubr.f32.mxu0 0.0
    %317 = vmatmul.mubr.f32.gmra.mxu0 %v177
    %v318 = vpop.f32.mrf.mxu0
    %v319 = vadd.f32 %v122, %v318
    %v320 = vpop.f32.mrf.mxu0
    %321 = vmatprep.mubr.f32.mxu0 0.0
    %322 = vmatmul.mubr.f32.gmra.mxu0 %v180
    %v323 = vpop.f32.mrf.mxu0
    %v324 = vadd.f32 %v127, %v323
    %v325 = vpop.f32.mrf.mxu0
    %326 = vmatprep.mubr.f32.mxu0 0.0
    %327 = vmatmul.mubr.f32.gmra.mxu0 %v183
    %v328 = vpop.f32.mrf.mxu0
    %v329 = vadd.f32 %v132, %v328
    %v330 = vpop.f32.mrf.mxu0
    %331 = vmatprep.mubr.f32.mxu0 0.0
    %332 = vmatmul.mubr.f32.gmra.mxu0 %v186
    %v333 = vpop.f32.mrf.mxu0
    %v334 = vadd.f32 %v137, %v333
    %v335 = vpop.f32.mrf.mxu0
    %336 = vdwg.mxu0
    %v337 = vmax.f32 %v259, 0.0
    %v338 = vmax.f32 %v264, 0.0
    %v339 = vmax.f32 %v269, 0.0
    %v340 = vmax.f32 %v274, 0.0
    %v341 = vmax.f32 %v279, 0.0
    %v342 = vmax.f32 %v284, 0.0
    %v343 = vmax.f32 %v289, 0.0
    %v344 = vmax.f32 %v294, 0.0
    %v345 = vmax.f32 %v299, 0.0
    %v346 = vmax.f32 %v304, 0.0
    %v347 = vmax.f32 %v309, 0.0
    %v348 = vmax.f32 %v314, 0.0
    %v349 = vmax.f32 %v319, 0.0
    %v350 = vmax.f32 %v324, 0.0
    %v351 = vmax.f32 %v329, 0.0
    %v352 = vmax.f32 %v334, 0.0
    %v353 = vld [vmem:[%s3] sm:$0x1]
    %v354 = vld [vmem:[#allocation2] sm:$0x1]
    %356 = vset.pattern.permute.xlu0 0
    %357 = vperm.xlu0 %356, %v354
    %v358 = vpop.permute.xlu0 %357
    %v360 = vlaneseq
    %v361 = vshrl.u32 %v360, 7
    %v362 = vsub.s32 0, %v361
    %v363 = vrot.slane %v358, %v362
    %364 = vmatprep.subr.mxu0 0.0
    %365 = vmatpush1.msra.mxu0 %v352
    %366 = vmatprep.subr.mxu0 0.0
    %367 = vmatpush1.msra.mxu0 %v351
    %368 = vmatprep.subr.mxu0 0.0
    %369 = vmatpush1.msra.mxu0 %v350
    %370 = vmatprep.subr.mxu0 0.0
    %371 = vmatpush1.msra.mxu0 %v349
    %372 = vmatprep.subr.mxu0 0.0
    %373 = vmatpush1.msra.mxu0 %v348
    %374 = vmatprep.subr.mxu0 0.0
    %375 = vmatpush1.msra.mxu0 %v347
    %376 = vmatprep.subr.mxu0 0.0
    %377 = vmatpush1.msra.mxu0 %v346
    %378 = vmatprep.subr.mxu0 0.0
    %379 = vmatpush1.msra.mxu0 %v345
    %380 = vmatprep.subr.mxu0 0.0
    %381 = vmatpush1.msra.mxu0 %v344
    %382 = vmatprep.subr.mxu0 0.0
    %383 = vmatpush1.msra.mxu0 %v343
    %384 = vmatprep.subr.mxu0 0.0
    %385 = vmatpush1.msra.mxu0 %v342
    %386 = vmatprep.subr.mxu0 0.0
    %387 = vmatpush1.msra.mxu0 %v341
    %388 = vmatprep.subr.mxu0 0.0
    %389 = vmatpush1.msra.mxu0 %v340
    %390 = vmatprep.subr.mxu0 0.0
    %391 = vmatpush1.msra.mxu0 %v339
    %392 = vmatprep.subr.mxu0 0.0
    %393 = vmatpush1.msra.mxu0 %v338
    %394 = vmatprep.subr.mxu0 0.0
    %395 = vmatpush1.msra.mxu0 %v337
    %396 = vmatprep.subr.mxu0 0.0
    %397 = vmatpush2.msra.mxu0 0.0
    %398 = vmatprep.subr.mxu0 0.0
    %399 = vmatpush2.msra.mxu0 0.0
    %400 = vmatprep.subr.mxu0 0.0
    %401 = vmatpush2.msra.mxu0 0.0
    %402 = vmatprep.subr.mxu0 0.0
    %403 = vmatpush2.msra.mxu0 0.0
    %404 = vmatprep.subr.mxu0 0.0
    %405 = vmatpush2.msra.mxu0 0.0
    %406 = vmatprep.subr.mxu0 0.0
    %407 = vmatpush2.msra.mxu0 0.0
    %408 = vmatprep.subr.mxu0 0.0
    %409 = vmatpush2.msra.mxu0 0.0
    %410 = vmatprep.subr.mxu0 0.0
    %411 = vmatpush2.msra.mxu0 0.0
    %412 = vmatprep.subr.mxu0 0.0
    %413 = vmatpush2.msra.mxu0 0.0
    %414 = vmatprep.subr.mxu0 0.0
    %415 = vmatpush2.msra.mxu0 0.0
    %416 = vmatprep.subr.mxu0 0.0
    %417 = vmatpush2.msra.mxu0 0.0
    %418 = vmatprep.subr.mxu0 0.0
    %419 = vmatpush2.msra.mxu0 0.0
    %420 = vmatprep.subr.mxu0 0.0
    %421 = vmatpush2.msra.mxu0 0.0
    %422 = vmatprep.subr.mxu0 0.0
    %423 = vmatpush2.msra.mxu0 0.0
    %424 = vmatprep.subr.mxu0 0.0
    %425 = vmatpush2.msra.mxu0 0.0
    %426 = vmatprep.subr.mxu0 0.0
    %427 = vmatpush2.msra.mxu0 0.0
    %428 = vmatprep.mubr.f32.mxu0 0.0
    %429 = vmatmul.mubr.f32.gmra.mxu0 %v353
    %v430 = vpop.f32.mrf.mxu0
    %v431 = vadd.f32 %v363, %v430
    %v432 = vpop.f32.mrf.mxu0
    %433 = vdwg.mxu0
    %434 = vst [vmem:[#allocation3] sm:$0x1] %v431
    // Predicated region
    $region22: #{tpu_custom_call.1} parent=1 // pred_check
      _
    $region23: #{tpu_custom_call.1} parent=1 // pred_check_branch
      %436 = sbr.rel (0) target = $region25
    $region24: #{tpu_custom_call.1} parent=1 // pred_region
      %s438 = ssub.s32 16, 16
      %439 = vsyncadd [#allocation4], %s438
      %s441 = sshll.u32 [#allocation3], 4
      %s442 = int_to_ptr.vmem [resolvable:$true] %s441
      %444 = dma.vmem_to_hbm [thread:$0]  %s442, 16, %s5, [#allocation4]
    $region25: #{tpu_custom_call.1} parent=1 // pred_fallthru
      _
    // Predicated region
    $region26: #{tpu_custom_call.1} parent=1 // pred_check
      _
    $region27: #{tpu_custom_call.1} parent=1 // pred_check_branch
      %446 = sbr.rel (0) target = $region29
    $region28: #{tpu_custom_call.1} parent=1 // pred_region
      %447 = dma.done [#allocation4], 16
    $region29: #{tpu_custom_call.1} parent=1 // pred_fallthru
      _
    %448 = vsyncpa [#allocation4], 1

</llo_original>
